<compile_context>
chip_gen: v6e
topology: v6e:2x2x1
jax: 0.10.0
libtpu: 0.0.40
codegen_flags: <defaults>
</compile_context>

<pallas_src>
import functools

import jax
import jax.numpy as jnp
from jax import lax
from jax.experimental import pallas as pl
from jax.experimental.pallas import tpu as pltpu


_TARGET_IN_BLOCK_BYTES = 4 * 1024 * 1024    # pass-1 input tile target (v7x-safe w/ f32 acc)
_TARGET_OUT_BLOCK_BYTES = 8 * 1024 * 1024   # pass-2 output tile target (pure write stream)
_VMEM_LIMIT_BYTES = 48 * 1024 * 1024        # > v5e 16 MiB default scoped, < v7x 64 MiB physical


def _choose_tile(hw, bytes_per_spatial_elem, target_bytes):
    """Spatial tile length: ~target_bytes per block, multiple of 128, or full HW if it fits."""
    t = max(128, target_bytes // max(int(bytes_per_spatial_elem), 1))
    t = max(128, (t // 128) * 128)
    if t >= hw:
        return hw, 1                      # single full-extent tile (no 128 alignment needed)
    return t, pl.cdiv(hw, t)


def _pool_reduce_kernel(x_ref, w_ref, shift_ref, y_ref, acc_ref, *, hw, tile_hw, ragged):
    """Streaming global-sum + folded 1x1-conv / BN / ReLU.

    x_ref:     (1, Cin, tile_hw)        one spatial tile of one image
    w_ref:     (Cin, Cout)              conv weight, pre-transposed, * bn_scale / (H*W)
    shift_ref: (1, Cout)                folded BN shift
    y_ref:     (1, Cout, 1)             per-image result (written on the last HW tile only)
    acc_ref:   (1, Cin, tile_hw) f32    elementwise running sum (VPU adds only per tile)
    """
    k = pl.program_id(1)

    @pl.when(k == 0)
    def _init():
        acc_ref[...] = jnp.zeros_like(acc_ref)

    x = x_ref[...].astype(jnp.float32)
    if ragged:
        # Last HW tile reads past the array boundary (unspecified contents) -> mask it.
        col = lax.broadcasted_iota(jnp.int32, x.shape, dimension=2)
        limit = hw - k * tile_hw
        x = jnp.where(col < limit, x, 0.0)
    acc_ref[...] += x

    # Single cross-lane reduce + tiny MXU matmul + BN/ReLU, only on the final step.
    @pl.when(k == pl.num_programs(1) - 1)
    def _finish():
        s = jnp.sum(acc_ref[...], axis=2)                         # (1, Cin)
        y = jnp.dot(s, w_ref[...], preferred_element_type=jnp.float32)   # (1, Cout)
        y = jnp.maximum(y + shift_ref[...], 0.0)
        y_ref[...] = y[:, :, None]                                # (1, Cout, 1)


def _broadcast_kernel(y_ref, o_ref):
    """Bilinear upsample from a 1x1 source == constant broadcast over H*W.

    y_ref: (1, Cout, 1) f32
    o_ref: (1, Cout, tile_out)  lane-dense output tile
    """
    o_ref[...] = jnp.broadcast_to(y_ref[...], o_ref.shape).astype(o_ref.dtype)


def image_pool_forward(x, conv_w, bn_gamma, bn_beta, bn_mean, bn_var, eps=1e-5):
    """x: (N, Cin, H, W) NCHW.  conv_w: (Cout, Cin, 1, 1).  Returns (N, Cout, H, W)."""
    N, Cin, H, W = x.shape
    Cout = conv_w.shape[0]
    HW = H * W
    itemsize = jnp.dtype(x.dtype).itemsize

    # Fold BN (inference running stats) and the 1/(H*W) mean into the conv weight:
    #   y = relu( (sum_x / HW) @ W^T * scale + shift )
    #     = relu( sum_x @ w_folded + shift ),  w_folded = (W * scale[:, None])^T / HW
    scale = bn_gamma.astype(jnp.float32) / jnp.sqrt(bn_var.astype(jnp.float32) + eps)
    shift = (bn_beta.astype(jnp.float32)
             - bn_mean.astype(jnp.float32) * scale).reshape(1, Cout)
    w2d = conv_w.reshape(Cout, Cin).astype(jnp.float32)
    w_folded = (w2d * scale[:, None]).T / float(HW)               # (Cin, Cout)

    x_flat = x.reshape(N, Cin, HW)                                 # free view, no HBM copy

    # -------- Pass 1: streaming spatial reduction + folded conv/BN/ReLU --------
    tile_in, n_in_tiles = _choose_tile(HW, Cin * itemsize, _TARGET_IN_BLOCK_BYTES)
    ragged_in = (HW % tile_in) != 0

    reduce_kernel = functools.partial(
        _pool_reduce_kernel, hw=HW, tile_hw=tile_in, ragged=ragged_in)

    y = pl.pallas_call(
        reduce_kernel,
        out_shape=jax.ShapeDtypeStruct((N, Cout, 1), jnp.float32),
        grid_spec=pltpu.PrefetchScalarGridSpec(
            num_scalar_prefetch=0,
            grid=(N, n_in_tiles),
            in_specs=[
                pl.BlockSpec((1, Cin, tile_in), lambda n, k: (n, 0, k)),
                pl.BlockSpec((Cin, Cout), lambda n, k: (0, 0)),
                pl.BlockSpec((1, Cout), lambda n, k: (0, 0)),
            ],
            out_specs=pl.BlockSpec((1, Cout, 1), lambda n, k: (n, 0, 0)),
            scratch_shapes=[pltpu.VMEM((1, Cin, tile_in), jnp.float32)],
        ),
        compiler_params=pltpu.CompilerParams(
            dimension_semantics=("parallel", "arbitrary"),
            vmem_limit_bytes=_VMEM_LIMIT_BYTES,
        ),
    )(x_flat, w_folded, shift)

    # -------- Pass 2: lane-dense constant broadcast over the spatial axis --------
    tile_out, n_out_tiles = _choose_tile(HW, Cout * itemsize, _TARGET_OUT_BLOCK_BYTES)

    out_flat = pl.pallas_call(
        _broadcast_kernel,
        out_shape=jax.ShapeDtypeStruct((N, Cout, HW), x.dtype),
        grid_spec=pltpu.PrefetchScalarGridSpec(
            num_scalar_prefetch=0,
            grid=(N, n_out_tiles),
            in_specs=[pl.BlockSpec((1, Cout, 1), lambda n, k: (n, 0, 0))],
            out_specs=pl.BlockSpec((1, Cout, tile_out), lambda n, k: (n, 0, k)),
        ),
        compiler_params=pltpu.CompilerParams(
            dimension_semantics=("parallel", "parallel"),
            vmem_limit_bytes=_VMEM_LIMIT_BYTES,
        ),
    )(y)

    return out_flat.reshape(N, Cout, H, W)


def _reference(x, conv_w, bn_gamma, bn_beta, bn_mean, bn_var, eps=1e-5):
    """Pure-JAX reference for a sanity check."""
    pooled = jnp.mean(x.astype(jnp.float32), axis=(2, 3))          # (N, Cin)
    y = pooled @ conv_w.reshape(conv_w.shape[0], -1).T             # (N, Cout)
    y = (y - bn_mean) / jnp.sqrt(bn_var + eps) * bn_gamma + bn_beta
    y = jnp.maximum(y, 0.0)
    H, W = x.shape[2], x.shape[3]
    return jnp.broadcast_to(y[:, :, None, None], (x.shape[0], y.shape[1], H, W))


if __name__ == "__main__":
    N, Cin, Cout, H, W = 2, 4, 8, 16, 16

    key = jax.random.PRNGKey(0)
    k_x, k_w = jax.random.split(key)

    x = jax.random.normal(k_x, (N, Cin, H, W), dtype=jnp.float32)
    # PyTorch BN defaults: gamma=1, beta=0, running_mean=0, running_var=1.
    conv_w = jax.random.normal(k_w, (Cout, Cin, 1, 1), dtype=jnp.float32) * 0.1
    bn_gamma = jnp.ones((Cout,), jnp.float32)
    bn_beta = jnp.zeros((Cout,), jnp.float32)
    bn_mean = jnp.zeros((Cout,), jnp.float32)
    bn_var = jnp.ones((Cout,), jnp.float32)

    out = image_pool_forward(x, conv_w, bn_gamma, bn_beta, bn_mean, bn_var)
    out = jax.block_until_ready(out)

    ref = _reference(x, conv_w, bn_gamma, bn_beta, bn_mean, bn_var)
    assert out.shape == (N, Cout, H, W)
    assert jnp.allclose(out, ref, atol=1e-5, rtol=1e-5), "mismatch vs reference"

    print("KERNEL_OK")
</pallas_src>

<mosaic_0001>
module attributes {stable_mosaic.version = 11 : i64} {
  func.func @_pool_reduce_kernel(%arg0: i32, %arg1: i32, %arg2: memref<1x4x256xf32, #tpu.memory_space<vmem>>, %arg3: memref<4x8xf32, #tpu.memory_space<vmem>>, %arg4: memref<1x8xf32, #tpu.memory_space<vmem>>, %arg5: memref<1x8x1xf32, #tpu.memory_space<vmem>>, %arg6: memref<1x4x256xf32, #tpu.memory_space<vmem>>) attributes {dimension_semantics = [#tpu.dimension_semantics<parallel>, #tpu.dimension_semantics<arbitrary>], iteration_bounds = array<i64: 2, 1>, scalar_prefetch = 0 : i64, scratch_operands = 1 : i64, tpu.core_type = #tpu.core_type<tc>, window_params = [{transform_indices = @transform_0, window_bounds = array<i64: 1, 4, 256>}, {pipeline_mode = #tpu.pipeline_mode<synchronous>, transform_indices = @transform_1, window_bounds = array<i64: 4, 8>}, {pipeline_mode = #tpu.pipeline_mode<synchronous>, transform_indices = @transform_2, window_bounds = array<i64: 1, 8>}, {transform_indices = @transform_3, window_bounds = array<i64: 1, 8, 1>}]} {
    %c0_i32 = arith.constant 0 : i32
    %0 = arith.cmpi eq, %arg1, %c0_i32 : i32
    %1 = arith.extui %0 : i1 to i32
    %c0_i32_0 = arith.constant 0 : i32
    %2 = arith.cmpi ne, %1, %c0_i32_0 : i32
    scf.if %2 {
      %cst = arith.constant 0.000000e+00 : f32
      %10 = vector.broadcast %cst : f32 to vector<1x4x256xf32>
      %c0_11 = arith.constant 0 : index
      %c0_12 = arith.constant 0 : index
      %c0_13 = arith.constant 0 : index
      %11 = vector.load %arg6[%c0_11, %c0_12, %c0_13] : memref<1x4x256xf32, #tpu.memory_space<vmem>>, vector<1x4x256xf32>
      tpu.vector_store %arg6[%c0_11, %c0_12, %c0_13], %10 {strides = array<i32>} : memref<1x4x256xf32, #tpu.memory_space<vmem>>, vector<1x4x256xf32>,
    } else {
    }
    %c0 = arith.constant 0 : index
    %c0_1 = arith.constant 0 : index
    %c0_2 = arith.constant 0 : index
    %3 = vector.load %arg2[%c0, %c0_1, %c0_2] : memref<1x4x256xf32, #tpu.memory_space<vmem>>, vector<1x4x256xf32>
    %c0_3 = arith.constant 0 : index
    %c0_4 = arith.constant 0 : index
    %c0_5 = arith.constant 0 : index
    %4 = vector.load %arg6[%c0_3, %c0_4, %c0_5] : memref<1x4x256xf32, #tpu.memory_space<vmem>>, vector<1x4x256xf32>
    %5 = arith.addf %4, %3 : vector<1x4x256xf32>
    %c0_6 = arith.constant 0 : index
    %c0_7 = arith.constant 0 : index
    %c0_8 = arith.constant 0 : index
    %6 = vector.load %arg6[%c0_6, %c0_7, %c0_8] : memref<1x4x256xf32, #tpu.memory_space<vmem>>, vector<1x4x256xf32>
    tpu.vector_store %arg6[%c0_6, %c0_7, %c0_8], %5 {strides = array<i32>} : memref<1x4x256xf32, #tpu.memory_space<vmem>>, vector<1x4x256xf32>,
    %c0_i32_9 = arith.constant 0 : i32
    %7 = arith.cmpi eq, %arg1, %c0_i32_9 : i32
    %8 = arith.extui %7 : i1 to i32
    %c0_i32_10 = arith.constant 0 : i32
    %9 = arith.cmpi ne, %8, %c0_i32_10 : i32
    scf.if %9 {
      %c0_11 = arith.constant 0 : index
      %c0_12 = arith.constant 0 : index
      %c0_13 = arith.constant 0 : index
      %10 = vector.load %arg6[%c0_11, %c0_12, %c0_13] : memref<1x4x256xf32, #tpu.memory_space<vmem>>, vector<1x4x256xf32>
      %cst = arith.constant dense<0.000000e+00> : vector<1x4xf32>
      %11 = vector.multi_reduction <add>, %10, %cst [2] : vector<1x4x256xf32> to vector<1x4xf32>
      %c0_14 = arith.constant 0 : index
      %c0_15 = arith.constant 0 : index
      %12 = vector.load %arg3[%c0_14, %c0_15] : memref<4x8xf32, #tpu.memory_space<vmem>>, vector<4x8xf32>
      %cst_16 = arith.constant dense<0.000000e+00> : vector<1x8xf32>
      %13 = tpu.matmul %11, %12, %cst_16 {dimension_numbers = #tpu.dot_dimension_numbers<[1], [0], [0], [1], [0, 0, 1, 1], [], []>} : vector<1x4xf32>, vector<4x8xf32>, vector<1x8xf32> -> vector<1x8xf32>
      %c0_17 = arith.constant 0 : index
      %c0_18 = arith.constant 0 : index
      %14 = vector.load %arg4[%c0_17, %c0_18] : memref<1x8xf32, #tpu.memory_space<vmem>>, vector<1x8xf32>
      %15 = arith.addf %13, %14 : vector<1x8xf32>
      %cst_19 = arith.constant 0.000000e+00 : f32
      %16 = vector.broadcast %cst_19 : f32 to vector<1x8xf32>
      %17 = arith.maximumf %15, %16 : vector<1x8xf32>
      %18 = vector.shape_cast %17 : vector<1x8xf32> to vector<1x8x1xf32>
      %c0_20 = arith.constant 0 : index
      %c0_21 = arith.constant 0 : index
      %c0_22 = arith.constant 0 : index
      %19 = vector.load %arg5[%c0_20, %c0_21, %c0_22] : memref<1x8x1xf32, #tpu.memory_space<vmem>>, vector<1x8x1xf32>
      tpu.vector_store %arg5[%c0_20, %c0_21, %c0_22], %18 {strides = array<i32>} : memref<1x8x1xf32, #tpu.memory_space<vmem>>, vector<1x8x1xf32>,
    } else {
    }
    return
  }
  func.func @transform_0(%arg0: i32, %arg1: i32) -> (i32, i32, i32) {
    %c0_i32 = arith.constant 0 : i32
    %c0_i32_0 = arith.constant 0 : i32
    return %arg0, %c0_i32, %arg1 : i32, i32, i32
  }
  func.func @transform_1(%arg0: i32, %arg1: i32) -> (i32, i32) {
    %c0_i32 = arith.constant 0 : i32
    %c0_i32_0 = arith.constant 0 : i32
    %c0_i32_1 = arith.constant 0 : i32
    return %c0_i32, %c0_i32_0 : i32, i32
  }
  func.func @transform_2(%arg0: i32, %arg1: i32) -> (i32, i32) {
    %c0_i32 = arith.constant 0 : i32
    %c0_i32_0 = arith.constant 0 : i32
    %c0_i32_1 = arith.constant 0 : i32
    return %c0_i32, %c0_i32_0 : i32, i32
  }
  func.func @transform_3(%arg0: i32, %arg1: i32) -> (i32, i32, i32) {
    %c0_i32 = arith.constant 0 : i32
    %c0_i32_0 = arith.constant 0 : i32
    %c0_i32_1 = arith.constant 0 : i32
    return %arg0, %c0_i32, %c0_i32_0 : i32, i32, i32
  }
}

</mosaic_0001>

<llo_original>
// kernel: tpu_custom_call.1
$region0: #{tpu_custom_call.1}
  #allocation0 [shape = 'u32[]', space=smem, size = 0x4, offset = 0x4, fixed_abs, tag = 'smem constant byte address 0x4 - core index']
  #allocation1 [shape = 'u32[144,128]{1,0:T(1,128)}', space=vmem, size = 0x12000, scoped, tag = 'internal scratch']
  #allocation2 [shape = 'f32[1,4,256]{2,1,0:T(4,128)}', space=vmem, size = 0x1000, scoped, tag = 'scratch operand']
  %s0 = inlined_call_operand.hbm [shape: f32[2,4,256], index: 0, kind: input, shape index: {}]
  %s1 = inlined_call_operand.hbm [shape: f32[4,8], index: 1, kind: input, shape index: {}]
  %s2 = inlined_call_operand.vmem [shape: f32[1,8], index: 2, kind: input, shape index: {}]
  %s3 = inlined_call_operand.vmem [shape: f32[2,8,1], index: 3, kind: output, shape index: {}]
  %s4 = sld [smem:[#allocation0]]
  $region61: #{tpu_custom_call.1} parent=0
    _
  %s6 = ssub.s32 1, %s4
  %s7 = scalar_select 0, %s6, %s4
  $region1: #{tpu_custom_call.1} parent=0
    #allocation3 [shape = 'u8[8192]{0}', space=vmem, size = 0x2000, scoped, tag = 'input window, operand 0']
    #allocation4 [shape = 's32[2]{0}', space=sflag, size = 0x8, scoped, tag = 'scoped memory for tpu_custom_call.1']
    #allocation5 [shape = 'u8[2048]{0}', space=vmem, size = 0x800, scoped, tag = 'input window, operand 1, single buffered']
    #allocation6 [shape = 's32[1]{0}', space=sflag, size = 0x4, scoped, tag = 'scoped memory for tpu_custom_call.1']
    %8 = vsyncpa [#allocation4], 0
    %s9 = scalar_lea.sflag [#allocation4], 1
    %10 = vsyncpa %s9, 0
    %11 = vsyncpa [#allocation6], 0
    loop: start=0, step=1, limit=4
    $region2: #{tpu_custom_call.1} parent=1 // loop_pre_header
      _
    $region3: #{tpu_custom_call.1} parent=1 // loop_header
      %s13 = sphi 0, %s17
      %p14 = scmp.ge.s32.totalorder %s13, 4
      %s20 = sphi 0, %s32
      %s21 = sphi 0, %s28
      %s22 = sphi 0, %s20
      %s23 = sphi 0, %s21
      %s24 = sphi 0, %s22
      %s25 = sphi 0, %s23
      %s37 = sphi 0, %s39
      %s40 = sphi 0, %s37
      %s41 = sphi 0, %s40
      %s57 = sphi 0, %s41
      %s61 = sphi 0, %s61
      %s63 = sphi 0, %s61
      %s64 = sphi 0, %s63
      %s78 = sphi 0, %s64
      %s82 = sphi 0, %s82
      %s84 = sphi 0, %s82
      %s85 = sphi 0, %s84
      %s99 = sphi 0, %s85
      %s105 = sphi 0, %s107
      %s108 = sphi 0, %s105
      %s109 = sphi 0, %s108
      %s125 = sphi 0, %s109
    $region4: #{tpu_custom_call.1} parent=1 // loop_header_branch
      %16 = sbr.rel (%p14) target = $region8
    $region5: #{tpu_custom_call.1} parent=1 // loop_body
      %s18 = ssub.s32 %s13, 1
      %s19 = ssub.s32 %s13, 2
      %s26 = sadd.s32 1, %s21
      %p27 = scmp.ge.s32.totalorder %s26, 1
      %s28 = scalar_select %p27, 0, %s26
      %s29 = sadd.s32 1, %s20
      %s30 = scalar_select %p27, %s29, %s20
      %p31 = scmp.ge.s32.totalorder %s30, 2
      %s32 = scalar_select %p31, 0, %s30
      %s33 = ssub.s32 %s20, %s32
      %s34 = ssub.s32 %s21, %s28
      %s35 = sor.u32 %s33, %s34
      %p36 = scmp.eq.s32.totalorder %s35, 0
      %s38 = sadd.s32 %s37, 1
      %s39 = scalar_select %p36, %s37, %s38
      %p42 = pneg %p36
      %p43 = scmp.eq.s32.totalorder %s13, 1
      %p44 = por %p42, %p43
      %p45 = scmp.ne.s32.totalorder %s37, %s40
      %p46 = scmp.eq.s32.totalorder %s13, 0
      %p47 = por %p45, %p46
      %p48 = scmp.ne.s32.totalorder %s37, %s40
      %p49 = scmp.eq.s32.totalorder %s18, 1
      %p50 = por %p48, %p49
      %p51 = scmp.ne.s32.totalorder %s40, %s41
      %p52 = scmp.eq.s32.totalorder %s18, 0
      %p53 = por %p51, %p52
      %p54 = scmp.ne.s32.totalorder %s40, %s41
      %p55 = scmp.eq.s32.totalorder %s19, 1
      %p56 = por %p54, %p55
      %p58 = scmp.ne.s32.totalorder %s41, %s57
      %p59 = scmp.eq.s32.totalorder %s19, 0
      %p60 = por %p58, %p59
      %s62 = sadd.s32 %s61, 1
      %p65 = scmp.eq.s32.totalorder %s13, 1
      %p66 = scmp.ne.s32.totalorder %s61, %s63
      %p67 = scmp.eq.s32.totalorder %s13, 0
      %p68 = por %p66, %p67
      %p69 = scmp.ne.s32.totalorder %s61, %s63
      %p70 = scmp.eq.s32.totalorder %s18, 1
      %p71 = por %p69, %p70
      %p72 = scmp.ne.s32.totalorder %s63, %s64
      %p73 = scmp.eq.s32.totalorder %s18, 0
      %p74 = por %p72, %p73
      %p75 = scmp.ne.s32.totalorder %s63, %s64
      %p76 = scmp.eq.s32.totalorder %s19, 1
      %p77 = por %p75, %p76
      %p79 = scmp.ne.s32.totalorder %s64, %s78
      %p80 = scmp.eq.s32.totalorder %s19, 0
      %p81 = por %p79, %p80
      %s83 = sadd.s32 %s82, 1
      %p86 = scmp.eq.s32.totalorder %s13, 1
      %p87 = scmp.ne.s32.totalorder %s82, %s84
      %p88 = scmp.eq.s32.totalorder %s13, 0
      %p89 = por %p87, %p88
      %p90 = scmp.ne.s32.totalorder %s82, %s84
      %p91 = scmp.eq.s32.totalorder %s18, 1
      %p92 = por %p90, %p91
      %p93 = scmp.ne.s32.totalorder %s84, %s85
      %p94 = scmp.eq.s32.totalorder %s18, 0
      %p95 = por %p93, %p94
      %p96 = scmp.ne.s32.totalorder %s84, %s85
      %p97 = scmp.eq.s32.totalorder %s19, 1
      %p98 = por %p96, %p97
      %p100 = scmp.ne.s32.totalorder %s85, %s99
      %p101 = scmp.eq.s32.totalorder %s19, 0
      %p102 = por %p100, %p101
      %s103 = ssub.s32 %s20, %s32
      %p104 = scmp.eq.s32.totalorder %s103, 0
      %s106 = sadd.s32 %s105, 1
      %s107 = scalar_select %p104, %s105, %s106
      %p110 = pneg %p104
      %p111 = scmp.eq.s32.totalorder %s13, 1
      %p112 = por %p110, %p111
      %p113 = scmp.ne.s32.totalorder %s105, %s108
      %p114 = scmp.eq.s32.totalorder %s13, 0
      %p115 = por %p113, %p114
      %p116 = scmp.ne.s32.totalorder %s105, %s108
      %p117 = scmp.eq.s32.totalorder %s18, 1
      %p118 = por %p116, %p117
      %p119 = scmp.ne.s32.totalorder %s108, %s109
      %p120 = scmp.eq.s32.totalorder %s18, 0
      %p121 = por %p119, %p120
      %p122 = scmp.ne.s32.totalorder %s108, %s109
      %p123 = scmp.eq.s32.totalorder %s19, 1
      %p124 = por %p122, %p123
      %p126 = scmp.ne.s32.totalorder %s109, %s125
      %p127 = scmp.eq.s32.totalorder %s19, 0
      %p128 = por %p126, %p127
      %p129 = scmp.le.s32.totalorder 1, %s13
      %p130 = scmp.lt.s32.totalorder %s13, 3
      %p131 = pnand %p129, %p130
      %p132 = pneg %p131
      // Predicated region
      $region9: #{tpu_custom_call.1} parent=5 // pred_check
        _
      $region10: #{tpu_custom_call.1} parent=5 // pred_check_branch
        %134 = sbr.rel (%p131) target = $region12
      $region11: #{tpu_custom_call.1} parent=5 // pred_region
        %s135 = ssub.s32 %s13, 1
        // Predicated region
        $region13: #{tpu_custom_call.1} parent=11 // pred_check
          %p136 = pneg %p74
        $region14: #{tpu_custom_call.1} parent=11 // pred_check_branch
          %138 = sbr.rel (%p136) target = $region16
        $region15: #{tpu_custom_call.1} parent=11 // pred_region
          %s140 = ssub.s32 64, 64
          %141 = vsyncadd [#allocation6], %s140
          %s143 = sshll.u32 [#allocation5], 4
          %s144 = int_to_ptr.vmem [resolvable:$true] %s143
          %146 = dma.hbm_to_vmem [thread:$0]  %s1, 64, %s144, [#allocation6]
        $region16: #{tpu_custom_call.1} parent=11 // pred_fallthru
          _
        // Predicated region
        $region17: #{tpu_custom_call.1} parent=11 // pred_check
          %p147 = pneg %p95
        $region18: #{tpu_custom_call.1} parent=11 // pred_check_branch
          %149 = sbr.rel (%p147) target = $region20
        $region19: #{tpu_custom_call.1} parent=11 // pred_region
          _
        $region20: #{tpu_custom_call.1} parent=11 // pred_fallthru
          _
      $region12: #{tpu_custom_call.1} parent=5 // pred_fallthru
        _
      %p150 = scmp.lt.s32.totalorder %s13, 2
      // Predicated region
      $region21: #{tpu_custom_call.1} parent=5 // pred_check
        %p151 = pneg %p150
      $region22: #{tpu_custom_call.1} parent=5 // pred_check_branch
        %153 = sbr.rel (%p151) target = $region24
      $region23: #{tpu_custom_call.1} parent=5 // pred_region
        // Predicated region
        $region25: #{tpu_custom_call.1} parent=23 // pred_check
          %p154 = pneg %p47
        $region26: #{tpu_custom_call.1} parent=23 // pred_check_branch
          %156 = sbr.rel (%p154) target = $region28
        $region27: #{tpu_custom_call.1} parent=23 // pred_region
          %s157 = sand.u32 %s37, 1
          %s158 = scalar_lea.sflag [#allocation4], %s157
          %s159 = sand.u32 %s37, 1
          %s160 = smul.addr %s159, 8
          %s161 = scalar_lea.vmem [#allocation3], %s160
          %s162 = smul.u32 2, %s21
          %s164 = ssub.s32 128, 128
          %165 = vsyncadd %s158, %s164
          %s166 = smul.addr %s20, 2
          %s167 = sadd.s32 %s162, %s166
          %s168 = smul.addr %s167, 64
          %s169 = scalar_lea.hbm %s0, %s168
          %s171 = sshll.u32 %s161, 4
          %s172 = int_to_ptr.vmem [resolvable:$true] %s171
          %174 = dma.hbm_to_vmem [thread:$0]  %s169, 128, %s172, %s158
        $region28: #{tpu_custom_call.1} parent=23 // pred_fallthru
          _
      $region24: #{tpu_custom_call.1} parent=5 // pred_fallthru
        _
      %p175 = scmp.le.s32.totalorder 1, %s13
      %p176 = scmp.lt.s32.totalorder %s13, 3
      %p177 = pnand %p175, %p176
      %p178 = pneg %p177
      // Predicated region
      $region29: #{tpu_custom_call.1} parent=5 // pred_check
        _
      $region30: #{tpu_custom_call.1} parent=5 // pred_check_branch
        %180 = sbr.rel (%p177) target = $region32
      $region31: #{tpu_custom_call.1} parent=5 // pred_region
        %s181 = ssub.s32 %s13, 1
        %s182 = sand.u32 %s40, 1
        %s183 = scalar_lea.sflag [#allocation4], %s182
        %s184 = sand.u32 %s40, 1
        %s185 = smul.addr %s184, 8
        %s186 = scalar_lea.vmem [#allocation3], %s185
        // Predicated region
        $region33: #{tpu_custom_call.1} parent=31 // pred_check
          %p187 = pneg %p53
        $region34: #{tpu_custom_call.1} parent=31 // pred_check_branch
          %189 = sbr.rel (%p187) target = $region36
        $region35: #{tpu_custom_call.1} parent=31 // pred_region
          %190 = dma.done %s183, 128
        $region36: #{tpu_custom_call.1} parent=31 // pred_fallthru
          _
        // Predicated region
        $region37: #{tpu_custom_call.1} parent=31 // pred_check
          %p191 = pneg %p74
        $region38: #{tpu_custom_call.1} parent=31 // pred_check_branch
          %193 = sbr.rel (%p191) target = $region40
        $region39: #{tpu_custom_call.1} parent=31 // pred_region
          %194 = dma.done [#allocation6], 64
        $region40: #{tpu_custom_call.1} parent=31 // pred_fallthru
          _
        %s195 = sand.u32 %s40, 1
        %s196 = scalar_lea.sflag [#allocation4], %s195
        %s197 = sand.u32 %s40, 1
        %s198 = smul.addr %s197, 8
        %s199 = scalar_lea.vmem [#allocation3], %s198
        %p200 = pneg %p53
        %p201 = pneg %p50
        %p202 = pneg %p74
        %p203 = pneg %p71
        %p204 = pneg %p95
        %p205 = pneg %p92
        %p206 = pneg %p121
        %p207 = pneg %p118
        %p208 = scmp.lt.s32.totalorder %s22, 1
        %s209 = scalar_select %p208, %s22, 1
        %s210 = smul.addr %s209, 8
        %s211 = scalar_lea.vmem %s3, %s210
        %s212 = smul.u32 2, %s23
        %p213 = scmp.lt.s32.totalorder %s22, 1
        %s214 = scalar_select %p213, %s22, 1
        %s215 = smul.addr %s214, 8
        %s216 = scalar_lea.vmem %s3, %s215
        %p217 = scmp.eq.s32.totalorder %s23, 0
        // Predicated region
        $region41: #{tpu_custom_call.1} parent=31 // pred_check
          %p218 = pneg %p217
        $region42: #{tpu_custom_call.1} parent=31 // pred_check_branch
          %220 = sbr.rel (%p218) target = $region44
        $region43: #{tpu_custom_call.1} parent=31 // pred_region
          %221 = vst [vmem:[#allocation2] sm:$0xff] 0.0
        $region44: #{tpu_custom_call.1} parent=31 // pred_fallthru
          _
        %v222 = vld [vmem:[%s186] sm:$0xff]
        %v223 = vld [vmem:[#allocation2] sm:$0xff]
        %v224 = vadd.f32 %v223, %v222
        %225 = vst [vmem:[#allocation2] sm:$0xff] %v224
        // Predicated region
        $region45: #{tpu_custom_call.1} parent=31 // pred_check
          %p226 = pneg %p217
        $region46: #{tpu_custom_call.1} parent=31 // pred_check_branch
          %228 = sbr.rel (%p226) target = $region48
        $region47: #{tpu_custom_call.1} parent=31 // pred_region
          %v229 = vld [vmem:[#allocation2] sm:$0xff]
          %v231 = vcombine.high %v229, %v229
          %vm233 = vcmask 1043456
          %v234 = vsel %vm233, %v229, 0.0
          %v235 = vsel %vm233, %v231, 0.0
          %v236 = vadd.f32 %v234, %v235
          %237 = vadd.xlane.f32.xlu0 %v236
          %v238 = vpop.xlane.xlu0 %237
          %v239 = vld [vmem:[#allocation5] sm:$0xf]
          %v240 = vld [vmem:[%s2] sm:$0x1]
          %v242 = vlaneseq
          %v243 = vand.u32 %v242, 127
          %v244 = vlaneseq
          %v245 = vshrl.u32 %v244, 7
          %v246 = vsub.s32 %v243, %v245
          %v247 = vrot.slane %v238, %v246
          %vm248 = vcmask 31744
          %v249 = vsel %vm248, %v247, 0
          %v252 = vsel %vm233, %v239, 0
          %254 = vmatprep.subr.mxu0 0.0
          %255 = vmatpush1.msra.mxu0 0.0
          %256 = vmatprep.subr.mxu0 0.0
          %257 = vmatpush1.msra.mxu0 0.0
          %258 = vmatprep.subr.mxu0 0.0
          %259 = vmatpush1.msra.mxu0 0.0
          %260 = vmatprep.subr.mxu0 0.0
          %261 = vmatpush1.msra.mxu0 0.0
          %262 = vmatprep.subr.mxu0 0.0
          %263 = vmatpush1.msra.mxu0 0.0
          %264 = vmatprep.subr.mxu0 0.0
          %265 = vmatpush1.msra.mxu0 0.0
          %266 = vmatprep.subr.mxu0 0.0
          %267 = vmatpush1.msra.mxu0 0.0
          %268 = vmatprep.subr.mxu0 0.0
          %269 = vmatpush1.msra.mxu0 0.0
          %270 = vmatprep.subr.mxu0 0.0
          %271 = vmatpush1.msra.mxu0 0.0
          %272 = vmatprep.subr.mxu0 0.0
          %273 = vmatpush1.msra.mxu0 0.0
          %274 = vmatprep.subr.mxu0 0.0
          %275 = vmatpush1.msra.mxu0 0.0
          %276 = vmatprep.subr.mxu0 0.0
          %277 = vmatpush1.msra.mxu0 0.0
          %278 = vmatprep.subr.mxu0 0.0
          %279 = vmatpush1.msra.mxu0 0.0
          %280 = vmatprep.subr.mxu0 0.0
          %281 = vmatpush1.msra.mxu0 0.0
          %282 = vmatprep.subr.mxu0 0.0
          %283 = vmatpush1.msra.mxu0 0.0
          %284 = vmatprep.subr.mxu0 0.0
          %285 = vmatpush1.msra.mxu0 %v252
          %286 = vmatprep.subr.mxu0 0.0
          %287 = vmatpush2.msra.mxu0 0.0
          %288 = vmatprep.subr.mxu0 0.0
          %289 = vmatpush2.msra.mxu0 0.0
          %290 = vmatprep.subr.mxu0 0.0
          %291 = vmatpush2.msra.mxu0 0.0
          %292 = vmatprep.subr.mxu0 0.0
          %293 = vmatpush2.msra.mxu0 0.0
          %294 = vmatprep.subr.mxu0 0.0
          %295 = vmatpush2.msra.mxu0 0.0
          %296 = vmatprep.subr.mxu0 0.0
          %297 = vmatpush2.msra.mxu0 0.0
          %298 = vmatprep.subr.mxu0 0.0
          %299 = vmatpush2.msra.mxu0 0.0
          %300 = vmatprep.subr.mxu0 0.0
          %301 = vmatpush2.msra.mxu0 0.0
          %302 = vmatprep.subr.mxu0 0.0
          %303 = vmatpush2.msra.mxu0 0.0
          %304 = vmatprep.subr.mxu0 0.0
          %305 = vmatpush2.msra.mxu0 0.0
          %306 = vmatprep.subr.mxu0 0.0
          %307 = vmatpush2.msra.mxu0 0.0
          %308 = vmatprep.subr.mxu0 0.0
          %309 = vmatpush2.msra.mxu0 0.0
          %310 = vmatprep.subr.mxu0 0.0
          %311 = vmatpush2.msra.mxu0 0.0
          %312 = vmatprep.subr.mxu0 0.0
          %313 = vmatpush2.msra.mxu0 0.0
          %314 = vmatprep.subr.mxu0 0.0
          %315 = vmatpush2.msra.mxu0 0.0
          %316 = vmatprep.subr.mxu0 0.0
          %317 = vmatpush2.msra.mxu0 0.0
          %318 = vmatprep.mubr.f32.mxu0 0.0
          %319 = vmatmul.mubr.f32.gmra.mxu0 %v249
          %v320 = vpop.f32.mrf.mxu0
          %v321 = vadd.f32 %v240, %v320
          %v322 = vpop.f32.mrf.mxu0
          %323 = vdwg.mxu0
          %v324 = vmax.f32 %v321, 0.0
          %v325 = vlaneseq
          %v326 = vshrl.u32 %v325, 7
          %v327 = vsub.s32 0, %v326
          %v328 = vrot.slane %v324, %v327
          %330 = vbcast.lane.b32.xlu0 %v328, 256
          %v331 = vpop.permute.xlu0 %330
          %vm332 = vcmask 7168
          %333 = vst.msk [vmem:[%s216] sm:$0xff] %vm332, %v331
        $region48: #{tpu_custom_call.1} parent=31 // pred_fallthru
          _
        %p334 = scmp.lt.s32.totalorder %s22, 1
        %s335 = scalar_select %p334, %s22, 1
        %s336 = smul.addr %s335, 8
        %s337 = scalar_lea.vmem %s3, %s336
        // Predicated region
        $region49: #{tpu_custom_call.1} parent=31 // pred_check
          %p338 = pneg %p118
        $region50: #{tpu_custom_call.1} parent=31 // pred_check_branch
          %340 = sbr.rel (%p338) target = $region52
        $region51: #{tpu_custom_call.1} parent=31 // pred_region
          _
        $region52: #{tpu_custom_call.1} parent=31 // pred_fallthru
          _
      $region32: #{tpu_custom_call.1} parent=5 // pred_fallthru
        _
      %p341 = scmp.le.s32.totalorder 2, %s13
      // Predicated region
      $region53: #{tpu_custom_call.1} parent=5 // pred_check
        %p342 = pneg %p341
      $region54: #{tpu_custom_call.1} parent=5 // pred_check_branch
        %344 = sbr.rel (%p342) target = $region56
      $region55: #{tpu_custom_call.1} parent=5 // pred_region
        %s345 = ssub.s32 %s13, 2
        // Predicated region
        $region57: #{tpu_custom_call.1} parent=55 // pred_check
          %p346 = pneg %p124
        $region58: #{tpu_custom_call.1} parent=55 // pred_check_branch
          %348 = sbr.rel (%p346) target = $region60
        $region59: #{tpu_custom_call.1} parent=55 // pred_region
          %p349 = scmp.lt.s32.totalorder %s24, 1
          %s350 = scalar_select %p349, %s24, 1
          %s351 = smul.addr %s350, 8
          %s352 = scalar_lea.vmem %s3, %s351
        $region60: #{tpu_custom_call.1} parent=55 // pred_fallthru
          _
      $region56: #{tpu_custom_call.1} parent=5 // pred_fallthru
        _
    $region6: #{tpu_custom_call.1} parent=1 // loop_footer
      %s17 = sadd.s32 1, %s13
    $region7: #{tpu_custom_call.1} parent=1 // loop_footer_branch
      %12 = sbr.rel target = $region3
    $region8: #{tpu_custom_call.1} parent=1 // loop_exit
      _
    %353 = vsyncpa [#allocation4], 1
    %s354 = scalar_lea.sflag [#allocation4], 1
    %355 = vsyncpa %s354, 1
    %356 = vsyncpa [#allocation6], 1

</llo_original>
